<compile_context>
chip_gen: v7x
topology: tpu7x:2x2x1
jax: 0.10.0
libtpu: 0.0.40
codegen_flags: <defaults>
</compile_context>

<pallas_src>
import math

import jax
import jax.numpy as jnp
from jax.experimental import pallas as pl
from jax.experimental.pallas import tpu as pltpu


def _modrelu_kernel(re_ref, im_ref, bias_ref, out_re_ref, out_im_ref):
    re = re_ref[...]                      # (block_rows, L) float32
    im = im_ref[...]                      # (block_rows, L) float32
    b = bias_ref[...]                     # (1, L) float32, broadcasts over rows

    mag2 = re * re + im * im              # |z|^2
    inv_mag = jax.lax.rsqrt(mag2 + 1e-20)  # ~ 1/|z| on the EUP path; eps avoids 0/0
    mag = mag2 * inv_mag                  # |z|
    scale = jnp.maximum(mag + b, 0.0) * inv_mag   # relu(|z| + b) / |z|

    out_re_ref[...] = re * scale
    out_im_ref[...] = im * scale


def _choose_lane_width(D, max_lanes=4096):
    """Smallest multiple of lcm(D, 128) that is >= 512 (None if too large)."""
    base = math.lcm(D, 128)
    if base > max_lanes:
        return None
    L = base
    while L < 512 and L * 2 <= max_lanes:
        L *= 2
    return L


def modrelu(x: jax.Array, bias: jax.Array) -> jax.Array:
    """x: complex64 of shape (B, S, D); bias: float32 of shape (1, 1, D)."""
    B, S, D = x.shape
    rows = B * S
    total = rows * D

    # TODO(synk): keeping activations planar (2, B, S, D) float32 upstream /
    # downstream would remove the real/imag split + lax.complex recombine HBM
    # passes around the pallas_call boundary; complex64 cannot cross it.
    re = jnp.real(x).astype(jnp.float32).reshape(total)
    im = jnp.imag(x).astype(jnp.float32).reshape(total)
    b_flat = bias.astype(jnp.float32).reshape(D)

    L = _choose_lane_width(D)
    if L is not None:
        # Lane-dense layout. Each L-wide row holds L // D consecutive original
        # (length-D) rows, so the bias pattern repeats every D lanes.
        b_row = jnp.tile(b_flat, L // D).reshape(1, L)
        n_rows = pl.cdiv(total, L)
        pad = n_rows * L - total
        if pad:
            re = jnp.pad(re, (0, pad))
            im = jnp.pad(im, (0, pad))
        re2 = re.reshape(n_rows, L)
        im2 = im.reshape(n_rows, L)
    else:
        # TODO(synk): fallback for awkward D (lcm(D,128) too big): keep D on the
        # lane axis; stores are masked if D % 128 != 0.
        L = D
        b_row = b_flat.reshape(1, D)
        n_rows = rows
        re2 = re.reshape(rows, D)
        im2 = im.reshape(rows, D)

    # ~2 MiB per stream per grid step; 2 in + 2 out streams double-buffered
    # -> ~16 MiB VMEM, within the 32 MiB limit requested below on every gen.
    TARGET_BLOCK_BYTES = 2 * 1024 * 1024
    target_rows = max(8, (TARGET_BLOCK_BYTES // (4 * L)) // 8 * 8)
    block_rows = n_rows if n_rows <= target_rows else target_rows
    grid = (pl.cdiv(n_rows, block_rows),)

    data_spec = pl.BlockSpec((block_rows, L), lambda i: (i, 0))
    bias_spec = pl.BlockSpec((1, L), lambda i: (0, 0))  # constant tiny block, reused

    out_re, out_im = pl.pallas_call(
        _modrelu_kernel,
        out_shape=(
            jax.ShapeDtypeStruct((n_rows, L), jnp.float32),
            jax.ShapeDtypeStruct((n_rows, L), jnp.float32),
        ),
        grid_spec=pltpu.PrefetchScalarGridSpec(
            num_scalar_prefetch=0,
            grid=grid,
            in_specs=[data_spec, data_spec, bias_spec],
            out_specs=[data_spec, data_spec],
        ),
        compiler_params=pltpu.CompilerParams(
            dimension_semantics=("parallel",),
            vmem_limit_bytes=32 * 1024 * 1024,
        ),
    )(re2, im2, b_row)

    out_re = out_re.reshape(-1)[:total]
    out_im = out_im.reshape(-1)[:total]
    out = jax.lax.complex(out_re, out_im)
    return out.reshape(B, S, D)


def modrelu_ref(x, bias):
    """Pure-JAX reference matching the PyTorch forward."""
    magnitude = jnp.abs(x)
    phase_factor = x / (magnitude + 1e-10)
    relu_magnitude = jnp.maximum(magnitude + bias, 0.0)
    return relu_magnitude * phase_factor


def _run_case(key, B, S, D):
    k_re, k_im, k_b = jax.random.split(key, 3)
    x = (jax.random.normal(k_re, (B, S, D), dtype=jnp.float32)
         + 1j * jax.random.normal(k_im, (B, S, D), dtype=jnp.float32)
         ).astype(jnp.complex64)
    # Module __init__ uses zeros(1, 1, D); use a small nonzero bias so both
    # branches of the relu are exercised.
    bias = 0.5 * jax.random.normal(k_b, (1, 1, D), dtype=jnp.float32)

    out = jax.block_until_ready(modrelu(x, bias))
    ref = modrelu_ref(x, bias)
    assert out.shape == (B, S, D) and out.dtype == jnp.complex64
    assert jnp.allclose(out, ref, atol=1e-5, rtol=1e-5)


if __name__ == "__main__":
    key = jax.random.PRNGKey(0)
    k0, k1, k2 = jax.random.split(key, 3)

    _run_case(k0, 2, 8, 32)       # small test from the module spec (single block)
    _run_case(k1, 3, 100, 32)     # exercises flat padding to the lane width
    _run_case(k2, 4, 4096, 64)    # exercises a multi-step grid (2 blocks)

    print("KERNEL_OK")
</pallas_src>

<mosaic_0001>
module attributes {stable_mosaic.version = 11 : i64} {
  func.func @_modrelu_kernel(%arg0: i32, %arg1: memref<1x512xf32, #tpu.memory_space<vmem>>, %arg2: memref<1x512xf32, #tpu.memory_space<vmem>>, %arg3: memref<1x512xf32, #tpu.memory_space<vmem>>, %arg4: memref<1x512xf32, #tpu.memory_space<vmem>>, %arg5: memref<1x512xf32, #tpu.memory_space<vmem>>) attributes {dimension_semantics = [#tpu.dimension_semantics<parallel>], iteration_bounds = array<i64: 1>, scalar_prefetch = 0 : i64, scratch_operands = 0 : i64, tpu.core_type = #tpu.core_type<tc>, window_params = [{transform_indices = @transform_0, window_bounds = array<i64: 1, 512>}, {transform_indices = @transform_1, window_bounds = array<i64: 1, 512>}, {pipeline_mode = #tpu.pipeline_mode<synchronous>, transform_indices = @transform_2, window_bounds = array<i64: 1, 512>}, {transform_indices = @transform_3, window_bounds = array<i64: 1, 512>}, {transform_indices = @transform_4, window_bounds = array<i64: 1, 512>}]} {
    %c0 = arith.constant 0 : index
    %c0_0 = arith.constant 0 : index
    %0 = vector.load %arg1[%c0, %c0_0] : memref<1x512xf32, #tpu.memory_space<vmem>>, vector<1x512xf32>
    %c0_1 = arith.constant 0 : index
    %c0_2 = arith.constant 0 : index
    %1 = vector.load %arg2[%c0_1, %c0_2] : memref<1x512xf32, #tpu.memory_space<vmem>>, vector<1x512xf32>
    %c0_3 = arith.constant 0 : index
    %c0_4 = arith.constant 0 : index
    %2 = vector.load %arg3[%c0_3, %c0_4] : memref<1x512xf32, #tpu.memory_space<vmem>>, vector<1x512xf32>
    %3 = arith.mulf %0, %0 : vector<1x512xf32>
    %4 = arith.mulf %1, %1 : vector<1x512xf32>
    %5 = arith.addf %3, %4 : vector<1x512xf32>
    %cst = arith.constant 9.99999968E-21 : f32
    %6 = vector.broadcast %cst : f32 to vector<1x512xf32>
    %7 = arith.addf %5, %6 : vector<1x512xf32>
    %8 = math.rsqrt %7 : vector<1x512xf32>
    %9 = arith.mulf %5, %8 : vector<1x512xf32>
    %10 = arith.addf %9, %2 : vector<1x512xf32>
    %cst_5 = arith.constant 0.000000e+00 : f32
    %11 = vector.broadcast %cst_5 : f32 to vector<1x512xf32>
    %12 = arith.maximumf %10, %11 : vector<1x512xf32>
    %13 = arith.mulf %12, %8 : vector<1x512xf32>
    %14 = arith.mulf %0, %13 : vector<1x512xf32>
    %c0_6 = arith.constant 0 : index
    %c0_7 = arith.constant 0 : index
    %15 = vector.load %arg4[%c0_6, %c0_7] : memref<1x512xf32, #tpu.memory_space<vmem>>, vector<1x512xf32>
    tpu.vector_store %arg4[%c0_6, %c0_7], %14 {strides = array<i32>} : memref<1x512xf32, #tpu.memory_space<vmem>>, vector<1x512xf32>,
    %16 = arith.mulf %1, %13 : vector<1x512xf32>
    %c0_8 = arith.constant 0 : index
    %c0_9 = arith.constant 0 : index
    %17 = vector.load %arg5[%c0_8, %c0_9] : memref<1x512xf32, #tpu.memory_space<vmem>>, vector<1x512xf32>
    tpu.vector_store %arg5[%c0_8, %c0_9], %16 {strides = array<i32>} : memref<1x512xf32, #tpu.memory_space<vmem>>, vector<1x512xf32>,
    return
  }
  func.func @transform_0(%arg0: i32) -> (i32, i32) {
    %c0_i32 = arith.constant 0 : i32
    %c0_i32_0 = arith.constant 0 : i32
    return %arg0, %c0_i32 : i32, i32
  }
  func.func @transform_1(%arg0: i32) -> (i32, i32) {
    %c0_i32 = arith.constant 0 : i32
    %c0_i32_0 = arith.constant 0 : i32
    return %arg0, %c0_i32 : i32, i32
  }
  func.func @transform_2(%arg0: i32) -> (i32, i32) {
    %c0_i32 = arith.constant 0 : i32
    %c0_i32_0 = arith.constant 0 : i32
    %c0_i32_1 = arith.constant 0 : i32
    return %c0_i32, %c0_i32_0 : i32, i32
  }
  func.func @transform_3(%arg0: i32) -> (i32, i32) {
    %c0_i32 = arith.constant 0 : i32
    %c0_i32_0 = arith.constant 0 : i32
    return %arg0, %c0_i32 : i32, i32
  }
  func.func @transform_4(%arg0: i32) -> (i32, i32) {
    %c0_i32 = arith.constant 0 : i32
    %c0_i32_0 = arith.constant 0 : i32
    return %arg0, %c0_i32 : i32, i32
  }
}

</mosaic_0001>

<llo_original>
// kernel: tpu_custom_call.1
$region0: #{tpu_custom_call.1}
  #allocation0 [shape = 'u32[]', space=smem, size = 0x4, offset = 0x4, fixed_abs, tag = 'smem constant byte address 0x4 - core index']
  #allocation1 [shape = 'u32[144,128]{1,0:T(1,128)}', space=vmem, size = 0x12000, scoped, tag = 'internal scratch']
  %s0 = inlined_call_operand.hbm [shape: f32[1,512], index: 0, kind: input, shape index: {}]
  %s1 = inlined_call_operand.hbm [shape: f32[1,512], index: 1, kind: input, shape index: {}]
  %s2 = inlined_call_operand.vmem [shape: f32[1,512], index: 2, kind: input, shape index: {}]
  %s3 = inlined_call_operand.hbm [shape: f32[1,512], index: 3, kind: output, shape index: {0}]
  %s4 = inlined_call_operand.hbm [shape: f32[1,512], index: 4, kind: output, shape index: {1}]
  %5 = xla_tuple %s3, %s4
  %s6 = sld [smem:[#allocation0]]
  $region38: #{tpu_custom_call.1} parent=0
    _
  %s8 = ssub.s32 1, %s6
  %s9 = scalar_select 0, %s8, %s6
  $region1: #{tpu_custom_call.1} parent=0
    #allocation2 [shape = 'u8[2048]{0}', space=vmem, size = 0x800, scoped, tag = 'input window, operand 0, single buffered']
    #allocation3 [shape = 's32[1]{0}', space=sflag, size = 0x4, scoped, tag = 'scoped memory for tpu_custom_call.1']
    #allocation4 [shape = 's32[1]{0}', space=sflag, size = 0x4, scoped, tag = 'scoped memory for tpu_custom_call.1']
    #allocation5 [shape = 'u8[2048]{0}', space=vmem, size = 0x800, scoped, tag = 'input window, operand 1, single buffered']
    #allocation6 [shape = 's32[1]{0}', space=sflag, size = 0x4, scoped, tag = 'scoped memory for tpu_custom_call.1']
    #allocation7 [shape = 'u8[2048]{0}', space=vmem, size = 0x800, scoped, tag = 'output window, operand 0, single buffered']
    #allocation8 [shape = 'u8[2048]{0}', space=vmem, size = 0x800, scoped, tag = 'output window, operand 1, single buffered']
    #allocation9 [shape = 's32[1]{0}', space=sflag, size = 0x4, scoped, tag = 'scoped memory for tpu_custom_call.1']
    %10 = vsyncpa [#allocation3], 0
    %11 = vsyncpa [#allocation6], 0
    %12 = vsyncpa [#allocation4], 0
    %13 = vsyncpa [#allocation9], 0
    // Predicated region
    $region2: #{tpu_custom_call.1} parent=1 // pred_check
      _
    $region3: #{tpu_custom_call.1} parent=1 // pred_check_branch
      %15 = sbr.rel (0) target = $region5
    $region4: #{tpu_custom_call.1} parent=1 // pred_region
      %s17 = ssub.s32 64, 64
      %18 = vsyncadd [#allocation3], %s17
      %s20 = sshll.u32 [#allocation2], 4
      %s21 = int_to_ptr.vmem [resolvable:$true] %s20
      %23 = dma.hbm_to_vmem [thread:$0]  %s0, 64, %s21, [#allocation3]
    $region5: #{tpu_custom_call.1} parent=1 // pred_fallthru
      _
    // Predicated region
    $region6: #{tpu_custom_call.1} parent=1 // pred_check
      _
    $region7: #{tpu_custom_call.1} parent=1 // pred_check_branch
      %25 = sbr.rel (0) target = $region9
    $region8: #{tpu_custom_call.1} parent=1 // pred_region
      %s27 = ssub.s32 64, 64
      %28 = vsyncadd [#allocation6], %s27
      %s30 = sshll.u32 [#allocation5], 4
      %s31 = int_to_ptr.vmem [resolvable:$true] %s30
      %33 = dma.hbm_to_vmem [thread:$0]  %s1, 64, %s31, [#allocation6]
    $region9: #{tpu_custom_call.1} parent=1 // pred_fallthru
      _
    // Predicated region
    $region10: #{tpu_custom_call.1} parent=1 // pred_check
      _
    $region11: #{tpu_custom_call.1} parent=1 // pred_check_branch
      %35 = sbr.rel (0) target = $region13
    $region12: #{tpu_custom_call.1} parent=1 // pred_region
      _
    $region13: #{tpu_custom_call.1} parent=1 // pred_fallthru
      _
    // Predicated region
    $region14: #{tpu_custom_call.1} parent=1 // pred_check
      _
    $region15: #{tpu_custom_call.1} parent=1 // pred_check_branch
      %37 = sbr.rel (0) target = $region17
    $region16: #{tpu_custom_call.1} parent=1 // pred_region
      %38 = dma.done [#allocation3], 64
    $region17: #{tpu_custom_call.1} parent=1 // pred_fallthru
      _
    // Predicated region
    $region18: #{tpu_custom_call.1} parent=1 // pred_check
      _
    $region19: #{tpu_custom_call.1} parent=1 // pred_check_branch
      %40 = sbr.rel (0) target = $region21
    $region20: #{tpu_custom_call.1} parent=1 // pred_region
      %41 = dma.done [#allocation6], 64
    $region21: #{tpu_custom_call.1} parent=1 // pred_fallthru
      _
    %v42 = vld [vmem:[#allocation2] sm:$0xf]
    %v43 = vld [vmem:[#allocation5] sm:$0xf]
    %v44 = vld [vmem:[%s2] sm:$0xf]
    %v45 = vmul.f32 %v42, %v42
    %v46 = vmul.f32 %v43, %v43
    %v47 = vadd.f32 %v45, %v46
    %v48 = vadd.f32 %v47, 1e-20
    %v49 = vrsqrt.pop %v48
    %v50 = vmul.f32 %v47, %v49
    %v51 = vadd.f32 %v50, %v44
    %v52 = vmax.f32 %v51, 0.0
    %v53 = vmul.f32 %v52, %v49
    %v54 = vmul.f32 %v42, %v53
    %v55 = vlaneseq
    %vm56 = vcmp.ge.s32.totalorder %v55, 0
    %vm57 = vcmp.lt.s32.totalorder %v55, 512
    %vm58 = vmand %vm56, %vm57
    %59 = vst.msk [vmem:[#allocation7] sm:$0xf] %vm58, %v54
    %v60 = vmul.f32 %v43, %v53
    %61 = vst.msk [vmem:[#allocation8] sm:$0xf] %vm58, %v60
    // Predicated region
    $region22: #{tpu_custom_call.1} parent=1 // pred_check
      _
    $region23: #{tpu_custom_call.1} parent=1 // pred_check_branch
      %63 = sbr.rel (0) target = $region25
    $region24: #{tpu_custom_call.1} parent=1 // pred_region
      %s65 = ssub.s32 64, 64
      %66 = vsyncadd [#allocation4], %s65
      %s68 = sshll.u32 [#allocation7], 4
      %s69 = int_to_ptr.vmem [resolvable:$true] %s68
      %71 = dma.vmem_to_hbm [thread:$0]  %s69, 64, %s3, [#allocation4]
    $region25: #{tpu_custom_call.1} parent=1 // pred_fallthru
      _
    // Predicated region
    $region26: #{tpu_custom_call.1} parent=1 // pred_check
      _
    $region27: #{tpu_custom_call.1} parent=1 // pred_check_branch
      %73 = sbr.rel (0) target = $region29
    $region28: #{tpu_custom_call.1} parent=1 // pred_region
      %s75 = ssub.s32 64, 64
      %76 = vsyncadd [#allocation9], %s75
      %s78 = sshll.u32 [#allocation8], 4
      %s79 = int_to_ptr.vmem [resolvable:$true] %s78
      %81 = dma.vmem_to_hbm [thread:$0]  %s79, 64, %s4, [#allocation9]
    $region29: #{tpu_custom_call.1} parent=1 // pred_fallthru
      _
    // Predicated region
    $region30: #{tpu_custom_call.1} parent=1 // pred_check
      _
    $region31: #{tpu_custom_call.1} parent=1 // pred_check_branch
      %83 = sbr.rel (0) target = $region33
    $region32: #{tpu_custom_call.1} parent=1 // pred_region
      %84 = dma.done [#allocation4], 64
    $region33: #{tpu_custom_call.1} parent=1 // pred_fallthru
      _
    // Predicated region
    $region34: #{tpu_custom_call.1} parent=1 // pred_check
      _
    $region35: #{tpu_custom_call.1} parent=1 // pred_check_branch
      %86 = sbr.rel (0) target = $region37
    $region36: #{tpu_custom_call.1} parent=1 // pred_region
      %87 = dma.done [#allocation9], 64
    $region37: #{tpu_custom_call.1} parent=1 // pred_fallthru
      _
    %88 = vsyncpa [#allocation3], 1
    %89 = vsyncpa [#allocation6], 1
    %90 = vsyncpa [#allocation4], 1
    %91 = vsyncpa [#allocation9], 1

</llo_original>
